<compile_context>
chip_gen: v7x
topology: tpu7x:2x2x1
jax: 0.10.0
libtpu: 0.0.40
codegen_flags: <defaults>
</compile_context>

<pallas_src>
import functools

import jax
import jax.numpy as jnp
from jax import lax
from jax.experimental import pallas as pl
from jax.experimental.pallas import tpu as pltpu

_MASK_VALUE = -1e30
_VMEM_LIMIT_BYTES = 48 * 1024 * 1024  # > v5e 16 MiB default, < v7x 64 MiB physical


def _round_up(x, m):
    return ((x + m - 1) // m) * m


def _head_group_size(num_heads, head_dim):
    """Heads per matmul group: target a 128-lane (G*Dh) slab with G dividing num_heads."""
    g = max(1, min(num_heads, 128 // max(1, head_dim)))
    while num_heads % g:
        g -= 1
    return g


def kv_proj_kernel(x_ref, wkv_ref, bkv_ref, kv_ref):
    """Shared-head K/V projection, one (batch, seq-block) tile per grid step.

    x_ref  : (1, TS, E)    bf16 hidden-state block
    wkv_ref: (E, 2*Dh)     bf16 [k_proj | v_proj] weight^T (fused, lane-dense)
    bkv_ref: (1, 2*Dh)     f32  [0 | v_proj bias]   (k_proj has no bias)
    kv_ref : (1, TS, 2*Dh) bf16 output [K | V]
    """
    kv = jnp.dot(x_ref[0], wkv_ref[...], preferred_element_type=jnp.float32) + bkv_ref[...]
    kv_ref[0] = kv.astype(kv_ref.dtype)


def mqa_attn_kernel(xq_ref, kv_ref, wq_ref, bq_ref, wo_ref, bo_ref, out_ref,
                    q2_ref, ctx_ref, *, num_heads, head_dim, group_heads, seq_len,
                    exp_dtype):
    """One grid step = one (batch, query-block) tile.

    xq_ref : (1, TQ, E)      bf16 query block of hidden states
    kv_ref : (1, S, 2*Dh)    bf16 precomputed [K | V] for the whole (padded) sequence
    wq_ref : (E, E)          bf16 q_proj weight^T, `scaling` pre-folded
    bq_ref : (1, E)          f32  q_proj bias, `scaling` pre-folded
    wo_ref : (E, E)          bf16 out_proj weight^T
    bo_ref : (1, E)          f32  out_proj bias
    out_ref: (1, TQ, E)      attention output block
    q2_ref : (G*TQ, Dh)      bf16 VMEM scratch staging one head-group of queries
    ctx_ref: (TQ, E)         bf16 VMEM scratch accumulating per-head context
    """
    xq = xq_ref[0]                       # (TQ, E) bf16
    kv = kv_ref[0]                       # (S, 2*Dh) bf16
    src_len = kv.shape[0]
    blk_q = xq.shape[0]

    k_b = kv[:, :head_dim]               # (S, Dh) bf16
    v_b = kv[:, head_dim:]               # (S, Dh) bf16

    # Q projection on the MXU: bf16 inputs, f32 accumulation. Scaling already folded in.
    q = jnp.dot(xq, wq_ref[...], preferred_element_type=jnp.float32) + bq_ref[...]  # (TQ, E)
    q_b = q.astype(jnp.bfloat16)

    # Mask padded key positions (static branch: emitted only when padding exists).
    if src_len > seq_len:
        key_mask = lax.broadcasted_iota(jnp.int32, (1, src_len), 1) < seq_len
    else:
        key_mask = None

    # Contract the last axis of both operands -> no materialized k.T / XLU transpose.
    dnum = (((1,), (1,)), ((), ()))

    g_heads = group_heads
    n_groups = num_heads // g_heads
    for g in range(n_groups):            # small static group count -> unrolled
        # Stage G head slices of q into a (G*TQ, Dh) scratch (aligned slab stores only).
        for j in range(g_heads):
            h = g * g_heads + j
            q2_ref[j * blk_q:(j + 1) * blk_q, :] = q_b[:, h * head_dim:(h + 1) * head_dim]
        qg = q2_ref[...]                                                            # (G*TQ, Dh)

        # Multi-query attention: all heads attend to the single shared K/V head.
        s = lax.dot_general(qg, k_b, dnum, preferred_element_type=jnp.float32)      # (G*TQ, S)
        if key_mask is not None:
            s = jnp.where(key_mask, s, _MASK_VALUE)
        s = s - jnp.max(s, axis=-1, keepdims=True)
        if jnp.dtype(exp_dtype) != jnp.dtype(jnp.float32):
            s = s.astype(exp_dtype)       # optional bf16 exp on v6e/v7x EUP
        p = jnp.exp(s)
        denom = jnp.sum(p, axis=-1, keepdims=True, dtype=jnp.float32)               # (G*TQ, 1)

        # PV first, normalize after (flash ordering): scales (G*TQ, Dh) not (G*TQ, S).
        ctx_g = jnp.dot(p.astype(jnp.bfloat16), v_b,
                        preferred_element_type=jnp.float32)                          # (G*TQ, Dh)
        ctx_g = ctx_g * pl.reciprocal(denom, approx=True)

        for j in range(g_heads):
            h = g * g_heads + j
            ctx_ref[:, h * head_dim:(h + 1) * head_dim] = (
                ctx_g[j * blk_q:(j + 1) * blk_q, :].astype(jnp.bfloat16))

    # Heads are contiguous along channels -> matches the PyTorch
    # (B, H, T, Dh) -> transpose(1, 2) -> reshape(B, T, E) ordering.
    ctx = ctx_ref[...]                                                                # (TQ, E) bf16
    out = jnp.dot(ctx, wo_ref[...], preferred_element_type=jnp.float32) + bo_ref[...]
    out_ref[0] = out.astype(out_ref.dtype)


def whisper_mqa_attention(hidden_states, params, num_heads, *, block_q=128,
                          out_dtype=None, exp_in_bf16=False,
                          single_buffer_weights=True):
    """Pallas wrapper. hidden_states: (B, T, E). Returns (B, T, E).

    out_dtype: defaults to the input dtype; pass jnp.bfloat16 to halve output writeback.
    exp_in_bf16: enable bf16 exp (EUP bf16 path) on v6e/v7x; keep False on v5e.
    """
    B, T, E = hidden_states.shape
    head_dim = E // num_heads
    assert head_dim * num_heads == E, "embed_dim must be divisible by num_heads"
    scaling = head_dim ** -0.5
    out_dtype = hidden_states.dtype if out_dtype is None else out_dtype

    # --- query-block tiling: TQ multiple of 8, pad T up to a multiple of TQ ---
    # (blk_q=128 is a good default; on v6e it can be swept up to 256 once K/V are hoisted,
    #  but not blindly on v7x which has half the VMEM.)
    blk_q = min(block_q, _round_up(T, 8))
    t_pad = _round_up(T, blk_q)
    n_q = t_pad // blk_q

    x = hidden_states.astype(jnp.bfloat16)
    if t_pad != T:
        x = jnp.pad(x, ((0, 0), (0, t_pad - T), (0, 0)))

    # --- weight prep: transpose to (in, out), fold `scaling` into q_proj, bf16 matmul inputs ---
    wq_t = (params["q_proj_w"].T * scaling).astype(jnp.bfloat16)        # (E, E)
    bq = (params["q_proj_b"].astype(jnp.float32) * scaling).reshape(1, E)
    wk_t = params["k_proj_w"].T.astype(jnp.bfloat16)                    # (E, Dh)
    wv_t = params["v_proj_w"].T.astype(jnp.bfloat16)                    # (E, Dh)
    wkv = jnp.concatenate([wk_t, wv_t], axis=1)                         # (E, 2*Dh) fused, lane-dense
    bkv = jnp.concatenate([jnp.zeros((head_dim,), jnp.float32),
                           params["v_proj_b"].astype(jnp.float32)]).reshape(1, 2 * head_dim)
    wo_t = params["out_proj_w"].T.astype(jnp.bfloat16)                  # (E, E)
    bo = params["out_proj_b"].astype(jnp.float32).reshape(1, E)

    cparams = pltpu.CompilerParams(
        dimension_semantics=("parallel", "parallel"),
        vmem_limit_bytes=_VMEM_LIMIT_BYTES)

    # ---- pass 1: shared-head K/V projection (computed once, not once per query block) ----
    kv = pl.pallas_call(
        kv_proj_kernel,
        out_shape=jax.ShapeDtypeStruct((B, t_pad, 2 * head_dim), jnp.bfloat16),
        grid=(B, n_q),
        in_specs=[
            pl.BlockSpec((1, blk_q, E), lambda b, si: (b, si, 0)),
            pl.BlockSpec((E, 2 * head_dim), lambda b, si: (0, 0)),
            pl.BlockSpec((1, 2 * head_dim), lambda b, si: (0, 0)),
        ],
        out_specs=pl.BlockSpec((1, blk_q, 2 * head_dim), lambda b, si: (b, si, 0)),
        compiler_params=cparams,
    )(x, wkv, bkv)

    # ---- pass 2: attention over query blocks ----
    group_heads = _head_group_size(num_heads, head_dim)
    kernel = functools.partial(
        mqa_attn_kernel, num_heads=num_heads, head_dim=head_dim,
        group_heads=group_heads, seq_len=T,
        exp_dtype=jnp.bfloat16 if exp_in_bf16 else jnp.float32)

    def _const_spec(shape, mode):
        # Constant (grid-invariant) operand: same block every step (DMA revisiting skips re-copy).
        idx = lambda b, qi, n=len(shape): (0,) * n
        if mode is None:
            return pl.BlockSpec(shape, idx)
        return pl.BlockSpec(shape, idx, pipeline_mode=mode)

    def _run(weight_mode):
        out = pl.pallas_call(
            kernel,
            out_shape=jax.ShapeDtypeStruct((B, t_pad, E), out_dtype),
            grid=(B, n_q),
            in_specs=[
                pl.BlockSpec((1, blk_q, E), lambda b, qi: (b, qi, 0)),             # query block
                pl.BlockSpec((1, t_pad, 2 * head_dim), lambda b, qi: (b, 0, 0)),   # K/V (per batch)
                _const_spec((E, E), weight_mode),                                  # wq_t
                _const_spec((1, E), weight_mode),                                  # bq
                _const_spec((E, E), weight_mode),                                  # wo_t
                _const_spec((1, E), weight_mode),                                  # bo
            ],
            out_specs=pl.BlockSpec((1, blk_q, E), lambda b, qi: (b, qi, 0)),
            scratch_shapes=[
                pltpu.VMEM((group_heads * blk_q, head_dim), jnp.bfloat16),         # q head-group stage
                pltpu.VMEM((blk_q, E), jnp.bfloat16),                              # context accumulator
            ],
            compiler_params=cparams,
        )(x, kv, wq_t, bq, wo_t, bo)
        return out[:, :T, :] if t_pad != T else out

    if single_buffer_weights and hasattr(pl, "Buffered"):
        try:
            # Grid-invariant weights: single-buffer to reclaim VMEM. NOTE: this fallback only
            # fires when called eagerly (compilation is deferred under jax.jit); the 48 MiB
            # vmem limit is sized so the double-buffered fallback also fits on every generation.
            return _run(pl.Buffered(buffer_count=1))
        except Exception:
            pass
    return _run(None)


def reference_mqa(hidden_states, params, num_heads):
    """Plain-JAX f32 reference mirroring the PyTorch forward exactly."""
    B, T, E = hidden_states.shape
    head_dim = E // num_heads
    scaling = head_dim ** -0.5

    q = hidden_states @ params["q_proj_w"].T + params["q_proj_b"]     # (B, T, E)
    q = q * scaling
    k = hidden_states @ params["k_proj_w"].T                          # (B, T, Dh)
    v = hidden_states @ params["v_proj_w"].T + params["v_proj_b"]     # (B, T, Dh)

    q = q.reshape(B, T, num_heads, head_dim).transpose(0, 2, 1, 3)    # (B, H, T, Dh)
    q = q.reshape(B, num_heads * T, head_dim)

    attn = jnp.einsum("bqd,bkd->bqk", q, k)                           # (B, H*T, S)
    attn = attn.reshape(B, num_heads, T, T)
    attn = jax.nn.softmax(attn, axis=-1)
    attn = attn.reshape(B, num_heads * T, T)

    out = jnp.einsum("bqk,bkd->bqd", attn, v)                         # (B, H*T, Dh)
    out = out.reshape(B, num_heads, T, head_dim).transpose(0, 2, 1, 3)
    out = out.reshape(B, T, E)
    return out @ params["out_proj_w"].T + params["out_proj_b"]


def init_params(key, embed_dim, num_heads, dtype=jnp.float32):
    head_dim = embed_dim // num_heads
    keys = jax.random.split(key, 6)
    scale = 0.1
    return {
        # PyTorch nn.Linear weights are (out_features, in_features).
        "q_proj_w": scale * jax.random.normal(keys[0], (embed_dim, embed_dim), dtype),
        "q_proj_b": scale * jax.random.normal(keys[1], (embed_dim,), dtype),
        "k_proj_w": scale * jax.random.normal(keys[2], (head_dim, embed_dim), dtype),
        "v_proj_w": scale * jax.random.normal(keys[3], (head_dim, embed_dim), dtype),
        "v_proj_b": scale * jax.random.normal(keys[4], (head_dim,), dtype),
        "out_proj_w": scale * jax.random.normal(keys[5], (embed_dim, embed_dim), dtype),
        "out_proj_b": jnp.zeros((embed_dim,), dtype),
    }


if __name__ == "__main__":
    key = jax.random.PRNGKey(0)
    k_x, k_p, k_x2 = jax.random.split(key, 3)

    # Case 1: small, tile-aligned shapes (batch, seq, embed_dim).
    B, T, E, H = 2, 8, 32, 4
    x1 = jax.random.normal(k_x, (B, T, E), jnp.float32)
    params = init_params(k_p, E, H)

    out1 = jax.block_until_ready(whisper_mqa_attention(x1, params, H))
    ref1 = reference_mqa(x1, params, H)
    assert out1.shape == (B, T, E)
    assert jnp.allclose(out1, ref1, atol=2e-2, rtol=2e-2), "mismatch vs reference (aligned)"

    # Case 2: ragged sequence length -> exercises the padded / key-masked path.
    T2 = 13
    x2 = jax.random.normal(k_x2, (1, T2, E), jnp.float32)
    out2 = jax.block_until_ready(whisper_mqa_attention(x2, params, H))
    ref2 = reference_mqa(x2, params, H)
    assert out2.shape == (1, T2, E)
    assert jnp.allclose(out2, ref2, atol=2e-2, rtol=2e-2), "mismatch vs reference (padded)"

    print("KERNEL_OK")
</pallas_src>

<mosaic_0001>
module attributes {stable_mosaic.version = 11 : i64} {
  func.func @kv_proj_kernel(%arg0: i32, %arg1: i32, %arg2: memref<1x8x32xbf16, #tpu.memory_space<vmem>>, %arg3: memref<32x16xbf16, #tpu.memory_space<vmem>>, %arg4: memref<1x16xf32, #tpu.memory_space<vmem>>, %arg5: memref<1x8x16xbf16, #tpu.memory_space<vmem>>) attributes {dimension_semantics = [#tpu.dimension_semantics<parallel>, #tpu.dimension_semantics<parallel>], iteration_bounds = array<i64: 2, 1>, scalar_prefetch = 0 : i64, scratch_operands = 0 : i64, tpu.core_type = #tpu.core_type<tc>, window_params = [{transform_indices = @transform_0, window_bounds = array<i64: 1, 8, 32>}, {pipeline_mode = #tpu.pipeline_mode<synchronous>, transform_indices = @transform_1, window_bounds = array<i64: 32, 16>}, {pipeline_mode = #tpu.pipeline_mode<synchronous>, transform_indices = @transform_2, window_bounds = array<i64: 1, 16>}, {transform_indices = @transform_3, window_bounds = array<i64: 1, 8, 16>}]} {
    %c0 = arith.constant 0 : index
    %c0_0 = arith.constant 0 : index
    %c0_1 = arith.constant 0 : index
    %0 = vector.load %arg2[%c0, %c0_0, %c0_1] : memref<1x8x32xbf16, #tpu.memory_space<vmem>>, vector<1x8x32xbf16>
    %1 = vector.shape_cast %0 : vector<1x8x32xbf16> to vector<8x32xbf16>
    %c0_2 = arith.constant 0 : index
    %c0_3 = arith.constant 0 : index
    %2 = vector.load %arg3[%c0_2, %c0_3] : memref<32x16xbf16, #tpu.memory_space<vmem>>, vector<32x16xbf16>
    %cst = arith.constant dense<0.000000e+00> : vector<8x16xf32>
    %3 = tpu.matmul %1, %2, %cst {dimension_numbers = #tpu.dot_dimension_numbers<[1], [0], [0], [1], [0, 0, 1, 1], [], []>} : vector<8x32xbf16>, vector<32x16xbf16>, vector<8x16xf32> -> vector<8x16xf32>
    %c0_4 = arith.constant 0 : index
    %c0_5 = arith.constant 0 : index
    %4 = vector.load %arg4[%c0_4, %c0_5] : memref<1x16xf32, #tpu.memory_space<vmem>>, vector<1x16xf32>
    %5 = vector.broadcast %4 : vector<1x16xf32> to vector<8x16xf32>
    %6 = arith.addf %3, %5 : vector<8x16xf32>
    %7 = arith.truncf %6 : vector<8x16xf32> to vector<8x16xbf16>
    %c0_6 = arith.constant 0 : index
    %c0_7 = arith.constant 0 : index
    %c0_8 = arith.constant 0 : index
    %8 = vector.load %arg5[%c0_6, %c0_7, %c0_8] : memref<1x8x16xbf16, #tpu.memory_space<vmem>>, vector<1x8x16xbf16>
    %9 = vector.shape_cast %8 : vector<1x8x16xbf16> to vector<8x16xbf16>
    %10 = vector.shape_cast %7 : vector<8x16xbf16> to vector<1x8x16xbf16>
    tpu.vector_store %arg5[%c0_6, %c0_7, %c0_8], %10 {strides = array<i32>} : memref<1x8x16xbf16, #tpu.memory_space<vmem>>, vector<1x8x16xbf16>,
    return
  }
  func.func @transform_0(%arg0: i32, %arg1: i32) -> (i32, i32, i32) {
    %c0_i32 = arith.constant 0 : i32
    %c0_i32_0 = arith.constant 0 : i32
    return %arg0, %arg1, %c0_i32 : i32, i32, i32
  }
  func.func @transform_1(%arg0: i32, %arg1: i32) -> (i32, i32) {
    %c0_i32 = arith.constant 0 : i32
    %c0_i32_0 = arith.constant 0 : i32
    %c0_i32_1 = arith.constant 0 : i32
    return %c0_i32, %c0_i32_0 : i32, i32
  }
  func.func @transform_2(%arg0: i32, %arg1: i32) -> (i32, i32) {
    %c0_i32 = arith.constant 0 : i32
    %c0_i32_0 = arith.constant 0 : i32
    %c0_i32_1 = arith.constant 0 : i32
    return %c0_i32, %c0_i32_0 : i32, i32
  }
  func.func @transform_3(%arg0: i32, %arg1: i32) -> (i32, i32, i32) {
    %c0_i32 = arith.constant 0 : i32
    %c0_i32_0 = arith.constant 0 : i32
    return %arg0, %arg1, %c0_i32 : i32, i32, i32
  }
}

</mosaic_0001>

<llo_original>
// kernel: tpu_custom_call.1
$region0: #{tpu_custom_call.1}
  #allocation0 [shape = 'u32[]', space=smem, size = 0x4, offset = 0x4, fixed_abs, tag = 'smem constant byte address 0x4 - core index']
  #allocation1 [shape = 'u32[144,128]{1,0:T(1,128)}', space=vmem, size = 0x12000, scoped, tag = 'internal scratch']
  %s0 = inlined_call_operand.vmem [shape: bf16[2,8,32], index: 0, kind: input, shape index: {}]
  %s1 = inlined_call_operand.vmem [shape: bf16[32,16], index: 1, kind: input, shape index: {}]
  %s2 = inlined_call_operand.vmem [shape: f32[1,16], index: 2, kind: input, shape index: {}]
  %s3 = inlined_call_operand.hbm [shape: bf16[2,8,16], index: 3, kind: output, shape index: {}]
  %s4 = sld [smem:[#allocation0]]
  $region45: #{tpu_custom_call.1} parent=0
    _
  %s6 = ssub.s32 1, %s4
  %s7 = scalar_select 0, %s6, %s4
  $region1: #{tpu_custom_call.1} parent=0
    #allocation2 [shape = 'u8[4096]{0}', space=vmem, size = 0x1000, scoped, tag = 'output window, operand 0']
    #allocation3 [shape = 's32[2]{0}', space=sflag, size = 0x8, scoped, tag = 'scoped memory for tpu_custom_call.1']
    %8 = vsyncpa [#allocation3], 0
    %s9 = scalar_lea.sflag [#allocation3], 1
    %10 = vsyncpa %s9, 0
    loop: start=0, step=1, limit=4
    $region2: #{tpu_custom_call.1} parent=1 // loop_pre_header
      _
    $region3: #{tpu_custom_call.1} parent=1 // loop_header
      %s12 = sphi 0, %s16
      %p13 = scmp.ge.s32.totalorder %s12, 4
      %s19 = sphi 0, %s31
      %s20 = sphi 0, %s27
      %s21 = sphi 0, %s19
      %s22 = sphi 0, %s20
      %s23 = sphi 0, %s21
      %s24 = sphi 0, %s22
      %s36 = sphi 0, %s38
      %s39 = sphi 0, %s36
      %s40 = sphi 0, %s39
      %s56 = sphi 0, %s40
      %s60 = sphi 0, %s60
      %s62 = sphi 0, %s60
      %s63 = sphi 0, %s62
      %s77 = sphi 0, %s63
      %s81 = sphi 0, %s81
      %s83 = sphi 0, %s81
      %s84 = sphi 0, %s83
      %s98 = sphi 0, %s84
      %s106 = sphi 0, %s108
      %s109 = sphi 0, %s106
      %s110 = sphi 0, %s109
      %s126 = sphi 0, %s110
    $region4: #{tpu_custom_call.1} parent=1 // loop_header_branch
      %15 = sbr.rel (%p13) target = $region8
    $region5: #{tpu_custom_call.1} parent=1 // loop_body
      %s17 = ssub.s32 %s12, 1
      %s18 = ssub.s32 %s12, 2
      %s25 = sadd.s32 1, %s20
      %p26 = scmp.ge.s32.totalorder %s25, 1
      %s27 = scalar_select %p26, 0, %s25
      %s28 = sadd.s32 1, %s19
      %s29 = scalar_select %p26, %s28, %s19
      %p30 = scmp.ge.s32.totalorder %s29, 2
      %s31 = scalar_select %p30, 0, %s29
      %s32 = ssub.s32 %s19, %s31
      %s33 = ssub.s32 %s20, %s27
      %s34 = sor.u32 %s32, %s33
      %p35 = scmp.eq.s32.totalorder %s34, 0
      %s37 = sadd.s32 %s36, 1
      %s38 = scalar_select %p35, %s36, %s37
      %p41 = pneg %p35
      %p42 = scmp.eq.s32.totalorder %s12, 1
      %p43 = por %p41, %p42
      %p44 = scmp.ne.s32.totalorder %s36, %s39
      %p45 = scmp.eq.s32.totalorder %s12, 0
      %p46 = por %p44, %p45
      %p47 = scmp.ne.s32.totalorder %s36, %s39
      %p48 = scmp.eq.s32.totalorder %s17, 1
      %p49 = por %p47, %p48
      %p50 = scmp.ne.s32.totalorder %s39, %s40
      %p51 = scmp.eq.s32.totalorder %s17, 0
      %p52 = por %p50, %p51
      %p53 = scmp.ne.s32.totalorder %s39, %s40
      %p54 = scmp.eq.s32.totalorder %s18, 1
      %p55 = por %p53, %p54
      %p57 = scmp.ne.s32.totalorder %s40, %s56
      %p58 = scmp.eq.s32.totalorder %s18, 0
      %p59 = por %p57, %p58
      %s61 = sadd.s32 %s60, 1
      %p64 = scmp.eq.s32.totalorder %s12, 1
      %p65 = scmp.ne.s32.totalorder %s60, %s62
      %p66 = scmp.eq.s32.totalorder %s12, 0
      %p67 = por %p65, %p66
      %p68 = scmp.ne.s32.totalorder %s60, %s62
      %p69 = scmp.eq.s32.totalorder %s17, 1
      %p70 = por %p68, %p69
      %p71 = scmp.ne.s32.totalorder %s62, %s63
      %p72 = scmp.eq.s32.totalorder %s17, 0
      %p73 = por %p71, %p72
      %p74 = scmp.ne.s32.totalorder %s62, %s63
      %p75 = scmp.eq.s32.totalorder %s18, 1
      %p76 = por %p74, %p75
      %p78 = scmp.ne.s32.totalorder %s63, %s77
      %p79 = scmp.eq.s32.totalorder %s18, 0
      %p80 = por %p78, %p79
      %s82 = sadd.s32 %s81, 1
      %p85 = scmp.eq.s32.totalorder %s12, 1
      %p86 = scmp.ne.s32.totalorder %s81, %s83
      %p87 = scmp.eq.s32.totalorder %s12, 0
      %p88 = por %p86, %p87
      %p89 = scmp.ne.s32.totalorder %s81, %s83
      %p90 = scmp.eq.s32.totalorder %s17, 1
      %p91 = por %p89, %p90
      %p92 = scmp.ne.s32.totalorder %s83, %s84
      %p93 = scmp.eq.s32.totalorder %s17, 0
      %p94 = por %p92, %p93
      %p95 = scmp.ne.s32.totalorder %s83, %s84
      %p96 = scmp.eq.s32.totalorder %s18, 1
      %p97 = por %p95, %p96
      %p99 = scmp.ne.s32.totalorder %s84, %s98
      %p100 = scmp.eq.s32.totalorder %s18, 0
      %p101 = por %p99, %p100
      %s102 = ssub.s32 %s19, %s31
      %s103 = ssub.s32 %s20, %s27
      %s104 = sor.u32 %s102, %s103
      %p105 = scmp.eq.s32.totalorder %s104, 0
      %s107 = sadd.s32 %s106, 1
      %s108 = scalar_select %p105, %s106, %s107
      %p111 = pneg %p105
      %p112 = scmp.eq.s32.totalorder %s12, 1
      %p113 = por %p111, %p112
      %p114 = scmp.ne.s32.totalorder %s106, %s109
      %p115 = scmp.eq.s32.totalorder %s12, 0
      %p116 = por %p114, %p115
      %p117 = scmp.ne.s32.totalorder %s106, %s109
      %p118 = scmp.eq.s32.totalorder %s17, 1
      %p119 = por %p117, %p118
      %p120 = scmp.ne.s32.totalorder %s109, %s110
      %p121 = scmp.eq.s32.totalorder %s17, 0
      %p122 = por %p120, %p121
      %p123 = scmp.ne.s32.totalorder %s109, %s110
      %p124 = scmp.eq.s32.totalorder %s18, 1
      %p125 = por %p123, %p124
      %p127 = scmp.ne.s32.totalorder %s110, %s126
      %p128 = scmp.eq.s32.totalorder %s18, 0
      %p129 = por %p127, %p128
      %p130 = scmp.le.s32.totalorder 1, %s12
      %p131 = scmp.lt.s32.totalorder %s12, 3
      %p132 = pnand %p130, %p131
      %p133 = pneg %p132
      // Predicated region
      $region9: #{tpu_custom_call.1} parent=5 // pred_check
        _
      $region10: #{tpu_custom_call.1} parent=5 // pred_check_branch
        %135 = sbr.rel (%p132) target = $region12
      $region11: #{tpu_custom_call.1} parent=5 // pred_region
        %s136 = ssub.s32 %s12, 1
        // Predicated region
        $region13: #{tpu_custom_call.1} parent=11 // pred_check
          %p137 = pneg %p73
        $region14: #{tpu_custom_call.1} parent=11 // pred_check_branch
          %139 = sbr.rel (%p137) target = $region16
        $region15: #{tpu_custom_call.1} parent=11 // pred_region
          _
        $region16: #{tpu_custom_call.1} parent=11 // pred_fallthru
          _
        // Predicated region
        $region17: #{tpu_custom_call.1} parent=11 // pred_check
          %p140 = pneg %p94
        $region18: #{tpu_custom_call.1} parent=11 // pred_check_branch
          %142 = sbr.rel (%p140) target = $region20
        $region19: #{tpu_custom_call.1} parent=11 // pred_region
          _
        $region20: #{tpu_custom_call.1} parent=11 // pred_fallthru
          _
      $region12: #{tpu_custom_call.1} parent=5 // pred_fallthru
        _
      %p143 = scmp.lt.s32.totalorder %s12, 2
      // Predicated region
      $region21: #{tpu_custom_call.1} parent=5 // pred_check
        %p144 = pneg %p143
      $region22: #{tpu_custom_call.1} parent=5 // pred_check_branch
        %146 = sbr.rel (%p144) target = $region24
      $region23: #{tpu_custom_call.1} parent=5 // pred_region
        // Predicated region
        $region25: #{tpu_custom_call.1} parent=23 // pred_check
          %p147 = pneg %p46
        $region26: #{tpu_custom_call.1} parent=23 // pred_check_branch
          %149 = sbr.rel (%p147) target = $region28
        $region27: #{tpu_custom_call.1} parent=23 // pred_region
          %p150 = scmp.lt.s32.totalorder %s19, 1
          %s151 = scalar_select %p150, %s19, 1
          %p152 = scmp.lt.s32.totalorder %s20, 0
          %s153 = scalar_select %p152, %s20, 0
          %s154 = sadd.s32 %s153, %s151
          %s155 = smul.addr %s154, 4
          %s156 = scalar_lea.vmem %s0, %s155
        $region28: #{tpu_custom_call.1} parent=23 // pred_fallthru
          _
      $region24: #{tpu_custom_call.1} parent=5 // pred_fallthru
        _
      %p157 = scmp.le.s32.totalorder 1, %s12
      %p158 = scmp.lt.s32.totalorder %s12, 3
      %p159 = pnand %p157, %p158
      %p160 = pneg %p159
      // Predicated region
      $region29: #{tpu_custom_call.1} parent=5 // pred_check
        _
      $region30: #{tpu_custom_call.1} parent=5 // pred_check_branch
        %162 = sbr.rel (%p159) target = $region32
      $region31: #{tpu_custom_call.1} parent=5 // pred_region
        %s163 = ssub.s32 %s12, 1
        %p164 = scmp.lt.s32.totalorder %s21, 1
        %s165 = scalar_select %p164, %s21, 1
        %p166 = scmp.lt.s32.totalorder %s22, 0
        %s167 = scalar_select %p166, %s22, 0
        %s168 = sadd.s32 %s167, %s165
        %s169 = smul.addr %s168, 4
        %s170 = scalar_lea.vmem %s0, %s169
        %p171 = pneg %p52
        %p172 = pneg %p49
        %p173 = pneg %p73
        %p174 = pneg %p70
        %p175 = pneg %p94
        %p176 = pneg %p91
        %p177 = pneg %p122
        %p178 = pneg %p119
        %s179 = sand.u32 %s109, 1
        %s180 = scalar_lea.sflag [#allocation3], %s179
        %s181 = sand.u32 %s109, 1
        %s182 = smul.addr %s181, 4
        %s183 = scalar_lea.vmem [#allocation2], %s182
        %p184 = scmp.lt.s32.totalorder %s21, 1
        %s185 = scalar_select %p184, %s21, 1
        %p186 = scmp.lt.s32.totalorder %s22, 0
        %s187 = scalar_select %p186, %s22, 0
        %s188 = sadd.s32 %s187, %s185
        %s189 = smul.addr %s188, 4
        %s190 = scalar_lea.vmem %s0, %s189
        %v192 = vld [vmem:[%s190] sm:$0xf]
        %v193 = vld [vmem:[%s1] sm:$0xf]
        %v194 = vld [vmem:[%s1 + $0x4] sm:$0xf]
        %v195 = vld [vmem:[%s1 + $0x8] sm:$0xf]
        %v196 = vld [vmem:[%s1 + $0xc] sm:$0xf]
        %v197 = vld [vmem:[%s2] sm:$0x1]
        %v199 = vlaneseq
        %v200 = vshrl.u32 %v199, 7
        %v201 = vsub.s32 0, %v200
        %v202 = vrot.slane %v197, %v201
        %v208 = vunpack.c.l.b16 %v193
        %v209 = vunpack.c.l.b16 %v194
        %v210 = vunpack.c.l.b16 %v195
        %v211 = vunpack.c.l.b16 %v196
        %v212 = vpack.c.b16 %v209, %v208
        %v213 = vpack.c.b16 %v211, %v210
        %vm216 = vcmask 261120
        %v218 = vsel %vm216, %v192, 0
        %220 = vmatprep.subr.bf16.mxu0 0
        %221 = vmatpush1.bf16.msra.mxu0 %v212
        %222 = vmatprep.subr.bf16.mxu0 0
        %223 = vmatpush1.bf16.msra.mxu0 %v213
        %224 = vmatprep.subr.bf16.mxu0 0
        %225 = vmatpush1.bf16.msra.mxu0 0
        %226 = vmatprep.subr.bf16.mxu0 0
        %227 = vmatpush1.bf16.msra.mxu0 0
        %228 = vmatprep.subr.bf16.mxu0 0
        %229 = vmatpush1.bf16.msra.mxu0 0
        %230 = vmatprep.subr.bf16.mxu0 0
        %231 = vmatpush1.bf16.msra.mxu0 0
        %232 = vmatprep.subr.bf16.mxu0 0
        %233 = vmatpush1.bf16.msra.mxu0 0
        %234 = vmatprep.subr.bf16.mxu0 0
        %235 = vmatpush1.bf16.msra.mxu0 0
        %236 = vmatprep.subr.bf16.mxu0 0
        %237 = vmatpush1.bf16.msra.mxu0 0
        %238 = vmatprep.subr.bf16.mxu0 0
        %239 = vmatpush1.bf16.msra.mxu0 0
        %240 = vmatprep.subr.bf16.mxu0 0
        %241 = vmatpush1.bf16.msra.mxu0 0
        %242 = vmatprep.subr.bf16.mxu0 0
        %243 = vmatpush1.bf16.msra.mxu0 0
        %244 = vmatprep.subr.bf16.mxu0 0
        %245 = vmatpush1.bf16.msra.mxu0 0
        %246 = vmatprep.subr.bf16.mxu0 0
        %247 = vmatpush1.bf16.msra.mxu0 0
        %248 = vmatprep.subr.bf16.mxu0 0
        %249 = vmatpush1.bf16.msra.mxu0 0
        %250 = vmatprep.subr.bf16.mxu0 0
        %251 = vmatpush1.bf16.msra.mxu0 0
        %252 = vmatprep.mubr.bf16.mxu0 0
        %253 = vmatmul.mubr.bf16.gmra.mrb[0].mxu0 %v218
        %v254 = vpop.f32.mrb[0].mxu0
        %v255 = vadd.f32 %v202, %v254
        %v256 = vpop.f32.mrb[0].mxu0
        %v257 = vpop.f32.mrb[0].mxu0
        %v258 = vpop.f32.mrb[0].mxu0
        %259 = vdwg.mxu0
        %v260 = vpack.c.bf16 %v255, %v255
        %vm261 = vcmask 125952
        %262 = vst.msk [vmem:[%s183] sm:$0xf] %vm261, %v260
        %s263 = sand.u32 %s109, 1
        %s264 = scalar_lea.sflag [#allocation3], %s263
        %s265 = sand.u32 %s109, 1
        %s266 = smul.addr %s265, 4
        %s267 = scalar_lea.vmem [#allocation2], %s266
        // Predicated region
        $region33: #{tpu_custom_call.1} parent=31 // pred_check
          %p268 = pneg %p119
        $region34: #{tpu_custom_call.1} parent=31 // pred_check_branch
          %270 = sbr.rel (%p268) target = $region36
        $region35: #{tpu_custom_call.1} parent=31 // pred_region
          %s272 = ssub.s32 64, 64
          %273 = vsyncadd %s264, %s272
          %s274 = sadd.s32 %s22, %s21
          %s275 = smul.addr %s274, 64
          %s276 = scalar_lea.hbm %s3, %s275
          %s278 = sshll.u32 %s267, 4
          %s279 = int_to_ptr.vmem [resolvable:$true] %s278
          %281 = dma.vmem_to_hbm [thread:$0]  %s279, 64, %s276, %s264
        $region36: #{tpu_custom_call.1} parent=31 // pred_fallthru
          _
      $region32: #{tpu_custom_call.1} parent=5 // pred_fallthru
        _
      %p282 = scmp.le.s32.totalorder 2, %s12
      // Predicated region
      $region37: #{tpu_custom_call.1} parent=5 // pred_check
        %p283 = pneg %p282
      $region38: #{tpu_custom_call.1} parent=5 // pred_check_branch
        %285 = sbr.rel (%p283) target = $region40
      $region39: #{tpu_custom_call.1} parent=5 // pred_region
        %s286 = ssub.s32 %s12, 2
        // Predicated region
        $region41: #{tpu_custom_call.1} parent=39 // pred_check
          %p287 = pneg %p125
        $region42: #{tpu_custom_call.1} parent=39 // pred_check_branch
          %289 = sbr.rel (%p287) target = $region44
        $region43: #{tpu_custom_call.1} parent=39 // pred_region
          %s290 = sand.u32 %s110, 1
          %s291 = scalar_lea.sflag [#allocation3], %s290
          %s292 = sand.u32 %s110, 1
          %s293 = smul.addr %s292, 4
          %s294 = scalar_lea.vmem [#allocation2], %s293
          %295 = dma.done %s291, 64
        $region44: #{tpu_custom_call.1} parent=39 // pred_fallthru
          _
      $region40: #{tpu_custom_call.1} parent=5 // pred_fallthru
        _
    $region6: #{tpu_custom_call.1} parent=1 // loop_footer
      %s16 = sadd.s32 1, %s12
    $region7: #{tpu_custom_call.1} parent=1 // loop_footer_branch
      %11 = sbr.rel target = $region3
    $region8: #{tpu_custom_call.1} parent=1 // loop_exit
      _
    %296 = vsyncpa [#allocation3], 1
    %s297 = scalar_lea.sflag [#allocation3], 1
    %298 = vsyncpa %s297, 1

</llo_original>
